<compile_context>
chip_gen: v7x
topology: tpu7x:2x2x1
jax: 0.10.0
libtpu: 0.0.40
codegen_flags: <defaults>
</compile_context>

<pallas_src>
import jax
import jax.numpy as jnp
from jax.experimental import pallas as pl
from jax.experimental.pallas import tpu as pltpu


def _cdiv(a, b):
    return -(-a // b)


def _round_up(x, m):
    return _cdiv(x, m) * m


def _lane_multiple():
    # v6e / v7x MXUs are 256 wide; v5e and older are 128-matched.
    try:
        kind = jax.devices()[0].device_kind.lower()
    except Exception:
        return 128
    return 256 if ("v6" in kind or "v7" in kind) else 128


def _vmem_budget_bytes():
    # Physical VMEM minus headroom for compiler temporaries / spill.
    try:
        cap = int(pltpu.get_tpu_info().vmem_capacity_bytes)
    except Exception:
        cap = 64 * 1024 * 1024  # conservative: v7x per-TensorCore VMEM
    return max(16 * 1024 * 1024, cap - 12 * 1024 * 1024)


def _autorec_kernel(r_ref, w1_ref, b1_ref, w2_ref, b2_ref, o_ref, h_ref):
    # TODO(synk): training-mode Dropout (stochastic masking) not implemented;
    # eval/inference semantics (identity) are used.
    @pl.when(pl.program_id(1) == 0)
    def _():
        # Encoder (Linear -> Sigmoid): computed once per batch tile, reused
        # across all n_missions tiles of the decoder.
        h = jnp.dot(r_ref[...], w1_ref[...], preferred_element_type=jnp.float32)
        h_ref[...] = jax.nn.sigmoid(h + b1_ref[...])

    # Decoder (Linear) for this n_missions tile; f32 accumulate via MXU.
    h = h_ref[...].astype(w2_ref.dtype)
    out = jnp.dot(h, w2_ref[...], preferred_element_type=jnp.float32) + b2_ref[...]
    o_ref[...] = out.astype(o_ref.dtype)


class UserBasedAutoRecKernel:
    """forward(r) = sigmoid(r @ W1 + b1) @ W2 + b2 as one fused pallas_call.

    Weights/biases are padded + cast exactly once at construction (hoisted out
    of the per-call path).  Note: compute_dtype=jnp.bfloat16 casts BOTH the
    input r and W1/W2 (bf16 MXU rate, half the resident-weight VMEM);
    accumulation, bias adds and the sigmoid stay f32.  Default keeps r's dtype.
    """

    def __init__(self, w1, b1, w2, b2, *, compute_dtype=None, out_dtype=None,
                 max_tile_b=1024):
        n_missions, hidden = w1.shape
        assert w2.shape == (hidden, n_missions)
        self.n_missions = n_missions
        self.hidden = hidden
        self.out_dtype = out_dtype
        self.max_tile_b = int(max_tile_b)

        cdtype = jnp.dtype(compute_dtype) if compute_dtype is not None else jnp.dtype(w1.dtype)
        c_size = cdtype.itemsize
        lane = _lane_multiple()
        budget = _vmem_budget_bytes()

        h_pad = _round_up(hidden, lane)
        n_pad0 = _round_up(n_missions, lane)

        # Resident encoder weights (single-buffered: grid-invariant).
        resident_bytes = n_pad0 * h_pad * c_size + h_pad * 4
        # TODO(synk): if W1 alone exceeds the VMEM budget (extreme
        # n_missions*hidden), a further grid axis tiling the encoder input
        # would be needed; not implemented.

        # tile_n: largest lane-multiple whose double-buffered W2/b2 tiles fit
        # in ~40% of what remains after the resident encoder weights.
        avail = max(budget - resident_bytes, 4 * 1024 * 1024)
        tile_n_cap = int(0.4 * avail) // (2 * (h_pad * c_size + 4))
        tile_n_cap = max(lane, (tile_n_cap // lane) * lane)
        tile_n = min(n_pad0, tile_n_cap)
        n_pad = _round_up(n_missions, tile_n)

        self.cdtype = cdtype
        self.c_size = c_size
        self.budget = budget
        self.h_pad = h_pad
        self.n_pad = n_pad
        self.tile_n = tile_n
        self.resident_bytes = resident_bytes
        self.sublane = 16 if c_size <= 2 else 8  # bf16 packs 2 rows / sublane

        f32 = jnp.float32
        self.w1_p = jnp.zeros((n_pad, h_pad), cdtype).at[:n_missions, :hidden].set(
            jnp.asarray(w1).astype(cdtype))
        self.b1_p = jnp.zeros((1, h_pad), f32).at[:, :hidden].set(
            jnp.asarray(b1).reshape(1, hidden).astype(f32))
        self.w2_p = jnp.zeros((h_pad, n_pad), cdtype).at[:hidden, :n_missions].set(
            jnp.asarray(w2).astype(cdtype))
        self.b2_p = jnp.zeros((1, n_pad), f32).at[:, :n_missions].set(
            jnp.asarray(b2).reshape(1, n_missions).astype(f32))

    def _plan_batch(self, B, out_size):
        # Per-batch-row VMEM: double-buffered r tile + double-buffered out tile
        # + f32 h scratch.
        per_row = 2 * self.n_pad * self.c_size + 2 * self.tile_n * out_size + self.h_pad * 4
        stream_n_bytes = 2 * (self.h_pad * self.tile_n * self.c_size + self.tile_n * 4)
        avail = max(self.budget - self.resident_bytes - stream_n_bytes, 0)
        cap = max(self.sublane, (avail // per_row // self.sublane) * self.sublane)
        max_tile_b = min(self.max_tile_b, cap)
        # Balanced tiles, and >=2 steps on the parallel axis when B allows
        # (keeps both v7x TensorCores busy; negligible cost on v5e/v6e).
        n_steps = max(2, _cdiv(B, max_tile_b))
        tile_b = _round_up(_cdiv(B, n_steps), self.sublane)
        tile_b = max(self.sublane, min(tile_b, max_tile_b))
        B_pad = _round_up(B, tile_b)
        return tile_b, B_pad

    def __call__(self, r):
        B, n_missions = r.shape
        assert n_missions == self.n_missions
        out_dtype = jnp.dtype(self.out_dtype) if self.out_dtype is not None else r.dtype
        out_size = out_dtype.itemsize
        cdtype = self.cdtype
        n_pad, h_pad, tile_n = self.n_pad, self.h_pad, self.tile_n
        tile_b, B_pad = self._plan_batch(B, out_size)
        grid = (B_pad // tile_b, n_pad // tile_n)

        # Skip the extra HBM copy when the activation is already aligned.
        if B_pad == B and n_pad == n_missions and r.dtype == cdtype:
            r_p = r
        else:
            r_p = jnp.zeros((B_pad, n_pad), cdtype).at[:B, :n_missions].set(r.astype(cdtype))

        resident = pl.Buffered(1)  # grid-invariant operands: nothing to prefetch
        grid_spec = pltpu.PrefetchScalarGridSpec(
            num_scalar_prefetch=0,
            grid=grid,
            in_specs=[
                pl.BlockSpec((tile_b, n_pad), lambda i, j: (i, 0)),                         # r (reused over j)
                pl.BlockSpec((n_pad, h_pad), lambda i, j: (0, 0), pipeline_mode=resident),  # W1 (resident)
                pl.BlockSpec((1, h_pad), lambda i, j: (0, 0), pipeline_mode=resident),      # b1 (resident)
                pl.BlockSpec((h_pad, tile_n), lambda i, j: (0, j)),                         # W2 (streamed over n)
                pl.BlockSpec((1, tile_n), lambda i, j: (0, j)),                             # b2 (streamed over n)
            ],
            out_specs=pl.BlockSpec((tile_b, tile_n), lambda i, j: (i, j)),
            scratch_shapes=[pltpu.VMEM((tile_b, h_pad), jnp.float32)],                      # h (per batch tile)
        )

        # Actual VMEM footprint + headroom, never the full physical VMEM.
        footprint = (self.resident_bytes
                     + 2 * (h_pad * tile_n * self.c_size + tile_n * 4)
                     + 2 * tile_b * n_pad * self.c_size
                     + 2 * tile_b * tile_n * out_size
                     + tile_b * h_pad * 4)
        vmem_limit = int(min(self.budget, int(1.3 * footprint) + (2 << 20)))

        cost = pl.CostEstimate(
            flops=4 * B_pad * n_pad * h_pad,
            transcendentals=B_pad * h_pad,
            bytes_accessed=(B_pad * n_pad * (self.c_size + out_size)
                            + 2 * n_pad * h_pad * self.c_size
                            + 4 * (h_pad + n_pad)),
        )

        out_p = pl.pallas_call(
            _autorec_kernel,
            out_shape=jax.ShapeDtypeStruct((B_pad, n_pad), out_dtype),
            grid_spec=grid_spec,
            compiler_params=pltpu.CompilerParams(
                dimension_semantics=("parallel", "arbitrary"),
                vmem_limit_bytes=vmem_limit,
            ),
            cost_estimate=cost,
        )(r_p, self.w1_p, self.b1_p, self.w2_p, self.b2_p)

        if B_pad == B and n_pad == n_missions:
            return out_p
        return out_p[:B, :n_missions]


def user_based_autorec_forward(r, w1, b1, w2, b2, *, compute_dtype=None, out_dtype=None):
    """One-off convenience wrapper (re-pads weights per call); prefer
    UserBasedAutoRecKernel for repeated forward calls."""
    return UserBasedAutoRecKernel(w1, b1, w2, b2, compute_dtype=compute_dtype,
                                  out_dtype=out_dtype)(r)


def reference_forward(r, w1, b1, w2, b2):
    h = jax.nn.sigmoid(r @ w1 + b1)
    return h @ w2 + b2


if __name__ == "__main__":
    # Small shapes consistent with the module: n_users (rows of the user-item
    # matrix) = 16, n_missions = 64, hidden_dim = 32.
    B, n_missions, hidden = 16, 64, 32

    key = jax.random.PRNGKey(0)
    k_r, k_w1, k_b1, k_w2, k_b2 = jax.random.split(key, 5)

    r = jax.random.normal(k_r, (B, n_missions), dtype=jnp.float32)
    # Deterministic parameter init (Kaiming-uniform-ish bounds like nn.Linear).
    bound1 = 1.0 / jnp.sqrt(n_missions)
    bound2 = 1.0 / jnp.sqrt(hidden)
    w1 = jax.random.uniform(k_w1, (n_missions, hidden), jnp.float32, -bound1, bound1)
    b1 = jax.random.uniform(k_b1, (1, hidden), jnp.float32, -bound1, bound1)
    w2 = jax.random.uniform(k_w2, (hidden, n_missions), jnp.float32, -bound2, bound2)
    b2 = jax.random.uniform(k_b2, (1, n_missions), jnp.float32, -bound2, bound2)

    ref = reference_forward(r, w1, b1, w2, b2)

    # f32 path: weights prepared once, forward called twice (padding hoisted).
    model_f32 = UserBasedAutoRecKernel(w1, b1, w2, b2)
    out = jax.block_until_ready(model_f32(r))
    assert out.shape == (B, n_missions)
    assert jnp.allclose(out, ref, atol=1e-5, rtol=1e-5)
    out2 = jax.block_until_ready(model_f32(r))
    assert jnp.allclose(out2, ref, atol=1e-5, rtol=1e-5)

    # bf16 compute path (casts r and W1/W2; f32 accumulate/bias/sigmoid).
    model_bf16 = UserBasedAutoRecKernel(w1, b1, w2, b2, compute_dtype=jnp.bfloat16)
    out_bf16 = jax.block_until_ready(model_bf16(r))
    assert out_bf16.shape == (B, n_missions)
    assert jnp.allclose(out_bf16, ref, atol=5e-2, rtol=5e-2)

    print("KERNEL_OK")
</pallas_src>

<mosaic_0001>
module attributes {stable_mosaic.version = 11 : i64} {
  func.func @_autorec_kernel(%arg0: i32, %arg1: i32, %arg2: memref<8x128xf32, #tpu.memory_space<vmem>>, %arg3: memref<128x128xf32, #tpu.memory_space<vmem>>, %arg4: memref<1x128xf32, #tpu.memory_space<vmem>>, %arg5: memref<128x128xf32, #tpu.memory_space<vmem>>, %arg6: memref<1x128xf32, #tpu.memory_space<vmem>>, %arg7: memref<8x128xf32, #tpu.memory_space<vmem>>, %arg8: memref<8x128xf32, #tpu.memory_space<vmem>>) attributes {dimension_semantics = [#tpu.dimension_semantics<parallel>, #tpu.dimension_semantics<arbitrary>], iteration_bounds = array<i64: 2, 1>, scalar_prefetch = 0 : i64, scratch_operands = 1 : i64, tpu.core_type = #tpu.core_type<tc>, window_params = [{transform_indices = @transform_0, window_bounds = array<i64: 8, 128>}, {pipeline_mode = #tpu.pipeline_mode<synchronous>, transform_indices = @transform_1, window_bounds = array<i64: 128, 128>}, {pipeline_mode = #tpu.pipeline_mode<synchronous>, transform_indices = @transform_2, window_bounds = array<i64: 1, 128>}, {transform_indices = @transform_3, window_bounds = array<i64: 128, 128>}, {transform_indices = @transform_4, window_bounds = array<i64: 1, 128>}, {transform_indices = @transform_5, window_bounds = array<i64: 8, 128>}]} {
    %c0_i32 = arith.constant 0 : i32
    %0 = arith.cmpi eq, %arg1, %c0_i32 : i32
    %1 = arith.extui %0 : i1 to i32
    %c0_i32_0 = arith.constant 0 : i32
    %2 = arith.cmpi ne, %1, %c0_i32_0 : i32
    scf.if %2 {
      %c0_8 = arith.constant 0 : index
      %c0_9 = arith.constant 0 : index
      %10 = vector.load %arg2[%c0_8, %c0_9] : memref<8x128xf32, #tpu.memory_space<vmem>>, vector<8x128xf32>
      %c0_10 = arith.constant 0 : index
      %c0_11 = arith.constant 0 : index
      %11 = vector.load %arg3[%c0_10, %c0_11] : memref<128x128xf32, #tpu.memory_space<vmem>>, vector<128x128xf32>
      %cst_12 = arith.constant dense<0.000000e+00> : vector<8x128xf32>
      %12 = tpu.matmul %10, %11, %cst_12 {dimension_numbers = #tpu.dot_dimension_numbers<[1], [0], [0], [1], [0, 0, 1, 1], [], []>} : vector<8x128xf32>, vector<128x128xf32>, vector<8x128xf32> -> vector<8x128xf32>
      %c0_13 = arith.constant 0 : index
      %c0_14 = arith.constant 0 : index
      %13 = vector.load %arg4[%c0_13, %c0_14] : memref<1x128xf32, #tpu.memory_space<vmem>>, vector<1x128xf32>
      %14 = vector.broadcast %13 : vector<1x128xf32> to vector<8x128xf32>
      %15 = arith.addf %12, %14 : vector<8x128xf32>
      %16 = arith.negf %15 : vector<8x128xf32>
      %17 = math.exp %16 : vector<8x128xf32>
      %cst_15 = arith.constant 1.000000e+00 : f32
      %18 = vector.broadcast %cst_15 : f32 to vector<8x128xf32>
      %19 = arith.addf %18, %17 : vector<8x128xf32>
      %20 = arith.divf %18, %19 : vector<8x128xf32>
      %c0_16 = arith.constant 0 : index
      %c0_17 = arith.constant 0 : index
      %21 = vector.load %arg8[%c0_16, %c0_17] : memref<8x128xf32, #tpu.memory_space<vmem>>, vector<8x128xf32>
      tpu.vector_store %arg8[%c0_16, %c0_17], %20 {strides = array<i32>} : memref<8x128xf32, #tpu.memory_space<vmem>>, vector<8x128xf32>,
    } else {
    }
    %c0 = arith.constant 0 : index
    %c0_1 = arith.constant 0 : index
    %3 = vector.load %arg8[%c0, %c0_1] : memref<8x128xf32, #tpu.memory_space<vmem>>, vector<8x128xf32>
    %c0_2 = arith.constant 0 : index
    %c0_3 = arith.constant 0 : index
    %4 = vector.load %arg5[%c0_2, %c0_3] : memref<128x128xf32, #tpu.memory_space<vmem>>, vector<128x128xf32>
    %cst = arith.constant dense<0.000000e+00> : vector<8x128xf32>
    %5 = tpu.matmul %3, %4, %cst {dimension_numbers = #tpu.dot_dimension_numbers<[1], [0], [0], [1], [0, 0, 1, 1], [], []>} : vector<8x128xf32>, vector<128x128xf32>, vector<8x128xf32> -> vector<8x128xf32>
    %c0_4 = arith.constant 0 : index
    %c0_5 = arith.constant 0 : index
    %6 = vector.load %arg6[%c0_4, %c0_5] : memref<1x128xf32, #tpu.memory_space<vmem>>, vector<1x128xf32>
    %7 = vector.broadcast %6 : vector<1x128xf32> to vector<8x128xf32>
    %8 = arith.addf %5, %7 : vector<8x128xf32>
    %c0_6 = arith.constant 0 : index
    %c0_7 = arith.constant 0 : index
    %9 = vector.load %arg7[%c0_6, %c0_7] : memref<8x128xf32, #tpu.memory_space<vmem>>, vector<8x128xf32>
    tpu.vector_store %arg7[%c0_6, %c0_7], %8 {strides = array<i32>} : memref<8x128xf32, #tpu.memory_space<vmem>>, vector<8x128xf32>,
    return
  }
  func.func @transform_0(%arg0: i32, %arg1: i32) -> (i32, i32) {
    %c0_i32 = arith.constant 0 : i32
    %c0_i32_0 = arith.constant 0 : i32
    return %arg0, %c0_i32 : i32, i32
  }
  func.func @transform_1(%arg0: i32, %arg1: i32) -> (i32, i32) {
    %c0_i32 = arith.constant 0 : i32
    %c0_i32_0 = arith.constant 0 : i32
    %c0_i32_1 = arith.constant 0 : i32
    return %c0_i32, %c0_i32_0 : i32, i32
  }
  func.func @transform_2(%arg0: i32, %arg1: i32) -> (i32, i32) {
    %c0_i32 = arith.constant 0 : i32
    %c0_i32_0 = arith.constant 0 : i32
    %c0_i32_1 = arith.constant 0 : i32
    return %c0_i32, %c0_i32_0 : i32, i32
  }
  func.func @transform_3(%arg0: i32, %arg1: i32) -> (i32, i32) {
    %c0_i32 = arith.constant 0 : i32
    %c0_i32_0 = arith.constant 0 : i32
    return %c0_i32, %arg1 : i32, i32
  }
  func.func @transform_4(%arg0: i32, %arg1: i32) -> (i32, i32) {
    %c0_i32 = arith.constant 0 : i32
    %c0_i32_0 = arith.constant 0 : i32
    return %c0_i32, %arg1 : i32, i32
  }
  func.func @transform_5(%arg0: i32, %arg1: i32) -> (i32, i32) {
    %c0_i32 = arith.constant 0 : i32
    return %arg0, %arg1 : i32, i32
  }
}

</mosaic_0001>

<llo_original>
// kernel: tpu_custom_call.1
$region0: #{tpu_custom_call.1}
  #allocation0 [shape = 'u32[]', space=smem, size = 0x4, offset = 0x4, fixed_abs, tag = 'smem constant byte address 0x4 - core index']
  #allocation1 [shape = 'u32[144,128]{1,0:T(1,128)}', space=vmem, size = 0x12000, scoped, tag = 'internal scratch']
  #allocation2 [shape = 'f32[8,128]{1,0:T(8,128)}', space=vmem, size = 0x1000, scoped, tag = 'scratch operand']
  %s0 = inlined_call_operand.hbm [shape: f32[16,128], index: 0, kind: input, shape index: {}]
  %s1 = inlined_call_operand.hbm [shape: f32[128,128], index: 1, kind: input, shape index: {}]
  %s2 = inlined_call_operand.vmem [shape: f32[1,128], index: 2, kind: input, shape index: {}]
  %s3 = inlined_call_operand.hbm [shape: f32[128,128], index: 3, kind: input, shape index: {}]
  %s4 = inlined_call_operand.vmem [shape: f32[1,128], index: 4, kind: input, shape index: {}]
  %s5 = inlined_call_operand.hbm [shape: f32[16,128], index: 5, kind: output, shape index: {}]
  %s6 = sld [smem:[#allocation0]]
  $region69: #{tpu_custom_call.1} parent=0
    _
  %s8 = ssub.s32 1, %s6
  %s9 = scalar_select 0, %s8, %s6
  $region1: #{tpu_custom_call.1} parent=0
    #allocation3 [shape = 'u8[8192]{0}', space=vmem, size = 0x2000, scoped, tag = 'input window, operand 0']
    #allocation4 [shape = 's32[2]{0}', space=sflag, size = 0x8, scoped, tag = 'scoped memory for tpu_custom_call.1']
    #allocation5 [shape = 's32[2]{0}', space=sflag, size = 0x8, scoped, tag = 'scoped memory for tpu_custom_call.1']
    #allocation6 [shape = 'u8[65536]{0}', space=vmem, size = 0x10000, scoped, tag = 'input window, operand 1, single buffered']
    #allocation7 [shape = 's32[1]{0}', space=sflag, size = 0x4, scoped, tag = 'scoped memory for tpu_custom_call.1']
    #allocation8 [shape = 'u8[65536]{0}', space=vmem, size = 0x10000, scoped, tag = 'input window, operand 3, single buffered']
    #allocation9 [shape = 'u8[8192]{0}', space=vmem, size = 0x2000, scoped, tag = 'output window, operand 0']
    %10 = vsyncpa [#allocation4], 0
    %s11 = scalar_lea.sflag [#allocation4], 1
    %12 = vsyncpa %s11, 0
    %13 = vsyncpa [#allocation7], 0
    %14 = vsyncpa [#allocation5], 0
    %s15 = scalar_lea.sflag [#allocation5], 1
    %16 = vsyncpa %s15, 0
    loop: start=0, step=1, limit=4
    $region2: #{tpu_custom_call.1} parent=1 // loop_pre_header
      _
    $region3: #{tpu_custom_call.1} parent=1 // loop_header
      %s18 = sphi 0, %s22
      %p19 = scmp.ge.s32.totalorder %s18, 4
      %s25 = sphi 0, %s37
      %s26 = sphi 0, %s33
      %s27 = sphi 0, %s25
      %s28 = sphi 0, %s26
      %s29 = sphi 0, %s27
      %s30 = sphi 0, %s28
      %s40 = sphi 0, %s42
      %s43 = sphi 0, %s40
      %s44 = sphi 0, %s43
      %s60 = sphi 0, %s44
      %s64 = sphi 0, %s64
      %s66 = sphi 0, %s64
      %s67 = sphi 0, %s66
      %s81 = sphi 0, %s67
      %s85 = sphi 0, %s85
      %s87 = sphi 0, %s85
      %s88 = sphi 0, %s87
      %s102 = sphi 0, %s88
      %s108 = sphi 0, %s110
      %s111 = sphi 0, %s108
      %s112 = sphi 0, %s111
      %s128 = sphi 0, %s112
      %s134 = sphi 0, %s136
      %s137 = sphi 0, %s134
      %s138 = sphi 0, %s137
      %s154 = sphi 0, %s138
      %s162 = sphi 0, %s164
      %s165 = sphi 0, %s162
      %s166 = sphi 0, %s165
      %s182 = sphi 0, %s166
    $region4: #{tpu_custom_call.1} parent=1 // loop_header_branch
      %21 = sbr.rel (%p19) target = $region8
    $region5: #{tpu_custom_call.1} parent=1 // loop_body
      %s23 = ssub.s32 %s18, 1
      %s24 = ssub.s32 %s18, 2
      %s31 = sadd.s32 1, %s26
      %p32 = scmp.ge.s32.totalorder %s31, 1
      %s33 = scalar_select %p32, 0, %s31
      %s34 = sadd.s32 1, %s25
      %s35 = scalar_select %p32, %s34, %s25
      %p36 = scmp.ge.s32.totalorder %s35, 2
      %s37 = scalar_select %p36, 0, %s35
      %s38 = ssub.s32 %s25, %s37
      %p39 = scmp.eq.s32.totalorder %s38, 0
      %s41 = sadd.s32 %s40, 1
      %s42 = scalar_select %p39, %s40, %s41
      %p45 = pneg %p39
      %p46 = scmp.eq.s32.totalorder %s18, 1
      %p47 = por %p45, %p46
      %p48 = scmp.ne.s32.totalorder %s40, %s43
      %p49 = scmp.eq.s32.totalorder %s18, 0
      %p50 = por %p48, %p49
      %p51 = scmp.ne.s32.totalorder %s40, %s43
      %p52 = scmp.eq.s32.totalorder %s23, 1
      %p53 = por %p51, %p52
      %p54 = scmp.ne.s32.totalorder %s43, %s44
      %p55 = scmp.eq.s32.totalorder %s23, 0
      %p56 = por %p54, %p55
      %p57 = scmp.ne.s32.totalorder %s43, %s44
      %p58 = scmp.eq.s32.totalorder %s24, 1
      %p59 = por %p57, %p58
      %p61 = scmp.ne.s32.totalorder %s44, %s60
      %p62 = scmp.eq.s32.totalorder %s24, 0
      %p63 = por %p61, %p62
      %s65 = sadd.s32 %s64, 1
      %p68 = scmp.eq.s32.totalorder %s18, 1
      %p69 = scmp.ne.s32.totalorder %s64, %s66
      %p70 = scmp.eq.s32.totalorder %s18, 0
      %p71 = por %p69, %p70
      %p72 = scmp.ne.s32.totalorder %s64, %s66
      %p73 = scmp.eq.s32.totalorder %s23, 1
      %p74 = por %p72, %p73
      %p75 = scmp.ne.s32.totalorder %s66, %s67
      %p76 = scmp.eq.s32.totalorder %s23, 0
      %p77 = por %p75, %p76
      %p78 = scmp.ne.s32.totalorder %s66, %s67
      %p79 = scmp.eq.s32.totalorder %s24, 1
      %p80 = por %p78, %p79
      %p82 = scmp.ne.s32.totalorder %s67, %s81
      %p83 = scmp.eq.s32.totalorder %s24, 0
      %p84 = por %p82, %p83
      %s86 = sadd.s32 %s85, 1
      %p89 = scmp.eq.s32.totalorder %s18, 1
      %p90 = scmp.ne.s32.totalorder %s85, %s87
      %p91 = scmp.eq.s32.totalorder %s18, 0
      %p92 = por %p90, %p91
      %p93 = scmp.ne.s32.totalorder %s85, %s87
      %p94 = scmp.eq.s32.totalorder %s23, 1
      %p95 = por %p93, %p94
      %p96 = scmp.ne.s32.totalorder %s87, %s88
      %p97 = scmp.eq.s32.totalorder %s23, 0
      %p98 = por %p96, %p97
      %p99 = scmp.ne.s32.totalorder %s87, %s88
      %p100 = scmp.eq.s32.totalorder %s24, 1
      %p101 = por %p99, %p100
      %p103 = scmp.ne.s32.totalorder %s88, %s102
      %p104 = scmp.eq.s32.totalorder %s24, 0
      %p105 = por %p103, %p104
      %s106 = ssub.s32 %s26, %s33
      %p107 = scmp.eq.s32.totalorder %s106, 0
      %s109 = sadd.s32 %s108, 1
      %s110 = scalar_select %p107, %s108, %s109
      %p113 = pneg %p107
      %p114 = scmp.eq.s32.totalorder %s18, 1
      %p115 = por %p113, %p114
      %p116 = scmp.ne.s32.totalorder %s108, %s111
      %p117 = scmp.eq.s32.totalorder %s18, 0
      %p118 = por %p116, %p117
      %p119 = scmp.ne.s32.totalorder %s108, %s111
      %p120 = scmp.eq.s32.totalorder %s23, 1
      %p121 = por %p119, %p120
      %p122 = scmp.ne.s32.totalorder %s111, %s112
      %p123 = scmp.eq.s32.totalorder %s23, 0
      %p124 = por %p122, %p123
      %p125 = scmp.ne.s32.totalorder %s111, %s112
      %p126 = scmp.eq.s32.totalorder %s24, 1
      %p127 = por %p125, %p126
      %p129 = scmp.ne.s32.totalorder %s112, %s128
      %p130 = scmp.eq.s32.totalorder %s24, 0
      %p131 = por %p129, %p130
      %s132 = ssub.s32 %s26, %s33
      %p133 = scmp.eq.s32.totalorder %s132, 0
      %s135 = sadd.s32 %s134, 1
      %s136 = scalar_select %p133, %s134, %s135
      %p139 = pneg %p133
      %p140 = scmp.eq.s32.totalorder %s18, 1
      %p141 = por %p139, %p140
      %p142 = scmp.ne.s32.totalorder %s134, %s137
      %p143 = scmp.eq.s32.totalorder %s18, 0
      %p144 = por %p142, %p143
      %p145 = scmp.ne.s32.totalorder %s134, %s137
      %p146 = scmp.eq.s32.totalorder %s23, 1
      %p147 = por %p145, %p146
      %p148 = scmp.ne.s32.totalorder %s137, %s138
      %p149 = scmp.eq.s32.totalorder %s23, 0
      %p150 = por %p148, %p149
      %p151 = scmp.ne.s32.totalorder %s137, %s138
      %p152 = scmp.eq.s32.totalorder %s24, 1
      %p153 = por %p151, %p152
      %p155 = scmp.ne.s32.totalorder %s138, %s154
      %p156 = scmp.eq.s32.totalorder %s24, 0
      %p157 = por %p155, %p156
      %s158 = ssub.s32 %s25, %s37
      %s159 = ssub.s32 %s26, %s33
      %s160 = sor.u32 %s158, %s159
      %p161 = scmp.eq.s32.totalorder %s160, 0
      %s163 = sadd.s32 %s162, 1
      %s164 = scalar_select %p161, %s162, %s163
      %p167 = pneg %p161
      %p168 = scmp.eq.s32.totalorder %s18, 1
      %p169 = por %p167, %p168
      %p170 = scmp.ne.s32.totalorder %s162, %s165
      %p171 = scmp.eq.s32.totalorder %s18, 0
      %p172 = por %p170, %p171
      %p173 = scmp.ne.s32.totalorder %s162, %s165
      %p174 = scmp.eq.s32.totalorder %s23, 1
      %p175 = por %p173, %p174
      %p176 = scmp.ne.s32.totalorder %s165, %s166
      %p177 = scmp.eq.s32.totalorder %s23, 0
      %p178 = por %p176, %p177
      %p179 = scmp.ne.s32.totalorder %s165, %s166
      %p180 = scmp.eq.s32.totalorder %s24, 1
      %p181 = por %p179, %p180
      %p183 = scmp.ne.s32.totalorder %s166, %s182
      %p184 = scmp.eq.s32.totalorder %s24, 0
      %p185 = por %p183, %p184
      %p186 = scmp.le.s32.totalorder 1, %s18
      %p187 = scmp.lt.s32.totalorder %s18, 3
      %p188 = pnand %p186, %p187
      %p189 = pneg %p188
      // Predicated region
      $region9: #{tpu_custom_call.1} parent=5 // pred_check
        _
      $region10: #{tpu_custom_call.1} parent=5 // pred_check_branch
        %191 = sbr.rel (%p188) target = $region12
      $region11: #{tpu_custom_call.1} parent=5 // pred_region
        %s192 = ssub.s32 %s18, 1
        // Predicated region
        $region13: #{tpu_custom_call.1} parent=11 // pred_check
          %p193 = pneg %p77
        $region14: #{tpu_custom_call.1} parent=11 // pred_check_branch
          %195 = sbr.rel (%p193) target = $region16
        $region15: #{tpu_custom_call.1} parent=11 // pred_region
          %s197 = ssub.s32 2048, 2048
          %198 = vsyncadd [#allocation7], %s197
          %s199 = sshll.u32 [#allocation6], 4
          %s200 = int_to_ptr.vmem [resolvable:$true] %s199
          %205 = dma.hbm_to_vmem [thread:$0]  %s1, 2048, %s200, [#allocation7], 128, 128, 8
        $region16: #{tpu_custom_call.1} parent=11 // pred_fallthru
          _
        // Predicated region
        $region17: #{tpu_custom_call.1} parent=11 // pred_check
          %p206 = pneg %p98
        $region18: #{tpu_custom_call.1} parent=11 // pred_check_branch
          %208 = sbr.rel (%p206) target = $region20
        $region19: #{tpu_custom_call.1} parent=11 // pred_region
          _
        $region20: #{tpu_custom_call.1} parent=11 // pred_fallthru
          _
        // Predicated region
        $region21: #{tpu_custom_call.1} parent=11 // pred_check
          %p209 = pneg %p124
        $region22: #{tpu_custom_call.1} parent=11 // pred_check_branch
          %211 = sbr.rel (%p209) target = $region24
        $region23: #{tpu_custom_call.1} parent=11 // pred_region
          %s213 = ssub.s32 2048, 2048
          %214 = vsyncadd [#allocation7], %s213
          %s215 = smul.addr %s28, 128
          %s216 = scalar_lea.hbm %s3, %s215
          %s217 = sshll.u32 [#allocation8], 4
          %s218 = int_to_ptr.vmem [resolvable:$true] %s217
          %223 = dma.hbm_to_vmem [thread:$0]  %s216, 2048, %s218, [#allocation7], 128, 128, 8
        $region24: #{tpu_custom_call.1} parent=11 // pred_fallthru
          _
        // Predicated region
        $region25: #{tpu_custom_call.1} parent=11 // pred_check
          %p224 = pneg %p150
        $region26: #{tpu_custom_call.1} parent=11 // pred_check_branch
          %226 = sbr.rel (%p224) target = $region28
        $region27: #{tpu_custom_call.1} parent=11 // pred_region
          %p227 = scmp.lt.s32.totalorder %s28, 0
          %s228 = scalar_select %p227, %s28, 0
          %s229 = scalar_lea.vmem %s4, %s228
        $region28: #{tpu_custom_call.1} parent=11 // pred_fallthru
          _
      $region12: #{tpu_custom_call.1} parent=5 // pred_fallthru
        _
      %p230 = scmp.lt.s32.totalorder %s18, 2
      // Predicated region
      $region29: #{tpu_custom_call.1} parent=5 // pred_check
        %p231 = pneg %p230
      $region30: #{tpu_custom_call.1} parent=5 // pred_check_branch
        %233 = sbr.rel (%p231) target = $region32
      $region31: #{tpu_custom_call.1} parent=5 // pred_region
        // Predicated region
        $region33: #{tpu_custom_call.1} parent=31 // pred_check
          %p234 = pneg %p50
        $region34: #{tpu_custom_call.1} parent=31 // pred_check_branch
          %236 = sbr.rel (%p234) target = $region36
        $region35: #{tpu_custom_call.1} parent=31 // pred_region
          %s237 = sand.u32 %s40, 1
          %s238 = scalar_lea.sflag [#allocation4], %s237
          %s239 = sand.u32 %s40, 1
          %s240 = smul.addr %s239, 8
          %s241 = scalar_lea.vmem [#allocation3], %s240
          %s243 = ssub.s32 128, 128
          %244 = vsyncadd %s238, %s243
          %s245 = smul.addr %s25, 128
          %s246 = scalar_lea.hbm %s0, %s245
          %s248 = sshll.u32 %s241, 4
          %s249 = int_to_ptr.vmem [resolvable:$true] %s248
          %251 = dma.hbm_to_vmem [thread:$0]  %s246, 128, %s249, %s238
        $region36: #{tpu_custom_call.1} parent=31 // pred_fallthru
          _
      $region32: #{tpu_custom_call.1} parent=5 // pred_fallthru
        _
      %p252 = scmp.le.s32.totalorder 1, %s18
      %p253 = scmp.lt.s32.totalorder %s18, 3
      %p254 = pnand %p252, %p253
      %p255 = pneg %p254
      // Predicated region
      $region37: #{tpu_custom_call.1} parent=5 // pred_check
        _
      $region38: #{tpu_custom_call.1} parent=5 // pred_check_branch
        %257 = sbr.rel (%p254) target = $region40
      $region39: #{tpu_custom_call.1} parent=5 // pred_region
        %s258 = ssub.s32 %s18, 1
        %s259 = sand.u32 %s43, 1
        %s260 = scalar_lea.sflag [#allocation4], %s259
        %s261 = sand.u32 %s43, 1
        %s262 = smul.addr %s261, 8
        %s263 = scalar_lea.vmem [#allocation3], %s262
        // Predicated region
        $region41: #{tpu_custom_call.1} parent=39 // pred_check
          %p264 = pneg %p56
        $region42: #{tpu_custom_call.1} parent=39 // pred_check_branch
          %266 = sbr.rel (%p264) target = $region44
        $region43: #{tpu_custom_call.1} parent=39 // pred_region
          %267 = dma.done %s260, 128
        $region44: #{tpu_custom_call.1} parent=39 // pred_fallthru
          _
        // Predicated region
        $region45: #{tpu_custom_call.1} parent=39 // pred_check
          %p268 = pneg %p77
        $region46: #{tpu_custom_call.1} parent=39 // pred_check_branch
          %270 = sbr.rel (%p268) target = $region48
        $region47: #{tpu_custom_call.1} parent=39 // pred_region
          %271 = dma.done [#allocation7], 2048
        $region48: #{tpu_custom_call.1} parent=39 // pred_fallthru
          _
        // Predicated region
        $region49: #{tpu_custom_call.1} parent=39 // pred_check
          %p272 = pneg %p124
        $region50: #{tpu_custom_call.1} parent=39 // pred_check_branch
          %274 = sbr.rel (%p272) target = $region52
        $region51: #{tpu_custom_call.1} parent=39 // pred_region
          %275 = dma.done [#allocation7], 2048
        $region52: #{tpu_custom_call.1} parent=39 // pred_fallthru
          _
        %s276 = sand.u32 %s43, 1
        %s277 = scalar_lea.sflag [#allocation4], %s276
        %s278 = sand.u32 %s43, 1
        %s279 = smul.addr %s278, 8
        %s280 = scalar_lea.vmem [#allocation3], %s279
        %p281 = pneg %p56
        %p282 = pneg %p53
        %p283 = pneg %p77
        %p284 = pneg %p74
        %p285 = pneg %p98
        %p286 = pneg %p95
        %p287 = pneg %p124
        %p288 = pneg %p121
        %p289 = scmp.lt.s32.totalorder %s28, 0
        %s290 = scalar_select %p289, %s28, 0
        %s291 = scalar_lea.vmem %s4, %s290
        %p292 = pneg %p150
        %p293 = pneg %p147
        %p294 = pneg %p178
        %p295 = pneg %p175
        %s296 = sand.u32 %s165, 1
        %s297 = scalar_lea.sflag [#allocation5], %s296
        %s298 = sand.u32 %s165, 1
        %s299 = smul.addr %s298, 8
        %s300 = scalar_lea.vmem [#allocation9], %s299
        %p301 = scmp.lt.s32.totalorder %s28, 0
        %s302 = scalar_select %p301, %s28, 0
        %s303 = scalar_lea.vmem %s4, %s302
        %p304 = scmp.eq.s32.totalorder %s28, 0
        // Predicated region
        $region53: #{tpu_custom_call.1} parent=39 // pred_check
          %p305 = pneg %p304
        $region54: #{tpu_custom_call.1} parent=39 // pred_check_branch
          %307 = sbr.rel (%p305) target = $region56
        $region55: #{tpu_custom_call.1} parent=39 // pred_region
          %v308 = vld [vmem:[%s263] sm:$0xff]
          %v309 = vld [vmem:[#allocation6] sm:$0xff]
          %v310 = vld [vmem:[#allocation6 + $0x8] sm:$0xff]
          %v311 = vld [vmem:[#allocation6 + $0x10] sm:$0xff]
          %v312 = vld [vmem:[#allocation6 + $0x18] sm:$0xff]
          %v313 = vld [vmem:[#allocation6 + $0x20] sm:$0xff]
          %v314 = vld [vmem:[#allocation6 + $0x28] sm:$0xff]
          %v315 = vld [vmem:[#allocation6 + $0x30] sm:$0xff]
          %v316 = vld [vmem:[#allocation6 + $0x38] sm:$0xff]
          %v317 = vld [vmem:[#allocation6 + $0x40] sm:$0xff]
          %v318 = vld [vmem:[#allocation6 + $0x48] sm:$0xff]
          %v319 = vld [vmem:[#allocation6 + $0x50] sm:$0xff]
          %v320 = vld [vmem:[#allocation6 + $0x58] sm:$0xff]
          %v321 = vld [vmem:[#allocation6 + $0x60] sm:$0xff]
          %v322 = vld [vmem:[#allocation6 + $0x68] sm:$0xff]
          %v323 = vld [vmem:[#allocation6 + $0x70] sm:$0xff]
          %v324 = vld [vmem:[#allocation6 + $0x78] sm:$0xff]
          %v325 = vld [vmem:[%s2] sm:$0x1]
          %v327 = vlaneseq
          %v328 = vshrl.u32 %v327, 7
          %v329 = vsub.s32 0, %v328
          %v330 = vrot.slane %v325, %v329
          %332 = vmatprep.subr.mxu0 0.0
          %333 = vmatpush1.msra.mxu0 %v309
          %334 = vmatprep.subr.mxu0 0.0
          %335 = vmatpush1.msra.mxu0 %v310
          %336 = vmatprep.subr.mxu0 0.0
          %337 = vmatpush1.msra.mxu0 %v311
          %338 = vmatprep.subr.mxu0 0.0
          %339 = vmatpush1.msra.mxu0 %v312
          %340 = vmatprep.subr.mxu0 0.0
          %341 = vmatpush1.msra.mxu0 %v313
          %342 = vmatprep.subr.mxu0 0.0
          %343 = vmatpush1.msra.mxu0 %v314
          %344 = vmatprep.subr.mxu0 0.0
          %345 = vmatpush1.msra.mxu0 %v315
          %346 = vmatprep.subr.mxu0 0.0
          %347 = vmatpush1.msra.mxu0 %v316
          %348 = vmatprep.subr.mxu0 0.0
          %349 = vmatpush1.msra.mxu0 %v317
          %350 = vmatprep.subr.mxu0 0.0
          %351 = vmatpush1.msra.mxu0 %v318
          %352 = vmatprep.subr.mxu0 0.0
          %353 = vmatpush1.msra.mxu0 %v319
          %354 = vmatprep.subr.mxu0 0.0
          %355 = vmatpush1.msra.mxu0 %v320
          %356 = vmatprep.subr.mxu0 0.0
          %357 = vmatpush1.msra.mxu0 %v321
          %358 = vmatprep.subr.mxu0 0.0
          %359 = vmatpush1.msra.mxu0 %v322
          %360 = vmatprep.subr.mxu0 0.0
          %361 = vmatpush1.msra.mxu0 %v323
          %362 = vmatprep.subr.mxu0 0.0
          %363 = vmatpush1.msra.mxu0 %v324
          %364 = vmatprep.subr.mxu0 0.0
          %365 = vmatpush1.msra.mxu0 0.0
          %366 = vmatprep.subr.mxu0 0.0
          %367 = vmatpush1.msra.mxu0 0.0
          %368 = vmatprep.subr.mxu0 0.0
          %369 = vmatpush1.msra.mxu0 0.0
          %370 = vmatprep.subr.mxu0 0.0
          %371 = vmatpush1.msra.mxu0 0.0
          %372 = vmatprep.subr.mxu0 0.0
          %373 = vmatpush1.msra.mxu0 0.0
          %374 = vmatprep.subr.mxu0 0.0
          %375 = vmatpush1.msra.mxu0 0.0
          %376 = vmatprep.subr.mxu0 0.0
          %377 = vmatpush1.msra.mxu0 0.0
          %378 = vmatprep.subr.mxu0 0.0
          %379 = vmatpush1.msra.mxu0 0.0
          %380 = vmatprep.subr.mxu0 0.0
          %381 = vmatpush1.msra.mxu0 0.0
          %382 = vmatprep.subr.mxu0 0.0
          %383 = vmatpush1.msra.mxu0 0.0
          %384 = vmatprep.subr.mxu0 0.0
          %385 = vmatpush1.msra.mxu0 0.0
          %386 = vmatprep.subr.mxu0 0.0
          %387 = vmatpush1.msra.mxu0 0.0
          %388 = vmatprep.subr.mxu0 0.0
          %389 = vmatpush1.msra.mxu0 0.0
          %390 = vmatprep.subr.mxu0 0.0
          %391 = vmatpush1.msra.mxu0 0.0
          %392 = vmatprep.subr.mxu0 0.0
          %393 = vmatpush1.msra.mxu0 0.0
          %394 = vmatprep.subr.mxu0 0.0
          %395 = vmatpush1.msra.mxu0 0.0
          %396 = vmatprep.mubr.f32.mxu0 0.0
          %397 = vmatmul.mubr.f32.gmra.mrb[0].mxu0 %v308
          %v398 = vpop.f32.mrb[0].mxu0
          %v399 = vadd.f32 %v330, %v398
          %v400 = vpop.f32.mrb[0].mxu0
          %401 = vdwg.mxu0
          %v402 = vxor.u32 %v399, 2147483648
          %v403 = vmul.f32 %v402, 1.442695
          %v404 = vpow.pop %v403
          %v405 = vadd.f32 %v404, 1.0
          %v406 = vrcp.pop %v405
          %v407 = vmul.f32 1.0, %v406
          %408 = vst [vmem:[#allocation2] sm:$0xff] %v407
        $region56: #{tpu_custom_call.1} parent=39 // pred_fallthru
          _
        %v409 = vld [vmem:[#allocation2] sm:$0xff]
        %v410 = vld [vmem:[#allocation8] sm:$0xff]
        %v411 = vld [vmem:[#allocation8 + $0x8] sm:$0xff]
        %v412 = vld [vmem:[#allocation8 + $0x10] sm:$0xff]
        %v413 = vld [vmem:[#allocation8 + $0x18] sm:$0xff]
        %v414 = vld [vmem:[#allocation8 + $0x20] sm:$0xff]
        %v415 = vld [vmem:[#allocation8 + $0x28] sm:$0xff]
        %v416 = vld [vmem:[#allocation8 + $0x30] sm:$0xff]
        %v417 = vld [vmem:[#allocation8 + $0x38] sm:$0xff]
        %v418 = vld [vmem:[#allocation8 + $0x40] sm:$0xff]
        %v419 = vld [vmem:[#allocation8 + $0x48] sm:$0xff]
        %v420 = vld [vmem:[#allocation8 + $0x50] sm:$0xff]
        %v421 = vld [vmem:[#allocation8 + $0x58] sm:$0xff]
        %v422 = vld [vmem:[#allocation8 + $0x60] sm:$0xff]
        %v423 = vld [vmem:[#allocation8 + $0x68] sm:$0xff]
        %v424 = vld [vmem:[#allocation8 + $0x70] sm:$0xff]
        %v425 = vld [vmem:[#allocation8 + $0x78] sm:$0xff]
        %v426 = vld [vmem:[%s303] sm:$0x1]
        %v428 = vlaneseq
        %v429 = vshrl.u32 %v428, 7
        %v430 = vsub.s32 0, %v429
        %v431 = vrot.slane %v426, %v430
        %433 = vmatprep.subr.mxu0 0.0
        %434 = vmatpush1.msra.mxu0 %v410
        %435 = vmatprep.subr.mxu0 0.0
        %436 = vmatpush1.msra.mxu0 %v411
        %437 = vmatprep.subr.mxu0 0.0
        %438 = vmatpush1.msra.mxu0 %v412
        %439 = vmatprep.subr.mxu0 0.0
        %440 = vmatpush1.msra.mxu0 %v413
        %441 = vmatprep.subr.mxu0 0.0
        %442 = vmatpush1.msra.mxu0 %v414
        %443 = vmatprep.subr.mxu0 0.0
        %444 = vmatpush1.msra.mxu0 %v415
        %445 = vmatprep.subr.mxu0 0.0
        %446 = vmatpush1.msra.mxu0 %v416
        %447 = vmatprep.subr.mxu0 0.0
        %448 = vmatpush1.msra.mxu0 %v417
        %449 = vmatprep.subr.mxu0 0.0
        %450 = vmatpush1.msra.mxu0 %v418
        %451 = vmatprep.subr.mxu0 0.0
        %452 = vmatpush1.msra.mxu0 %v419
        %453 = vmatprep.subr.mxu0 0.0
        %454 = vmatpush1.msra.mxu0 %v420
        %455 = vmatprep.subr.mxu0 0.0
        %456 = vmatpush1.msra.mxu0 %v421
        %457 = vmatprep.subr.mxu0 0.0
        %458 = vmatpush1.msra.mxu0 %v422
        %459 = vmatprep.subr.mxu0 0.0
        %460 = vmatpush1.msra.mxu0 %v423
        %461 = vmatprep.subr.mxu0 0.0
        %462 = vmatpush1.msra.mxu0 %v424
        %463 = vmatprep.subr.mxu0 0.0
        %464 = vmatpush1.msra.mxu0 %v425
        %465 = vmatprep.subr.mxu0 0.0
        %466 = vmatpush1.msra.mxu0 0.0
        %467 = vmatprep.subr.mxu0 0.0
        %468 = vmatpush1.msra.mxu0 0.0
        %469 = vmatprep.subr.mxu0 0.0
        %470 = vmatpush1.msra.mxu0 0.0
        %471 = vmatprep.subr.mxu0 0.0
        %472 = vmatpush1.msra.mxu0 0.0
        %473 = vmatprep.subr.mxu0 0.0
        %474 = vmatpush1.msra.mxu0 0.0
        %475 = vmatprep.subr.mxu0 0.0
        %476 = vmatpush1.msra.mxu0 0.0
        %477 = vmatprep.subr.mxu0 0.0
        %478 = vmatpush1.msra.mxu0 0.0
        %479 = vmatprep.subr.mxu0 0.0
        %480 = vmatpush1.msra.mxu0 0.0
        %481 = vmatprep.subr.mxu0 0.0
        %482 = vmatpush1.msra.mxu0 0.0
        %483 = vmatprep.subr.mxu0 0.0
        %484 = vmatpush1.msra.mxu0 0.0
        %485 = vmatprep.subr.mxu0 0.0
        %486 = vmatpush1.msra.mxu0 0.0
        %487 = vmatprep.subr.mxu0 0.0
        %488 = vmatpush1.msra.mxu0 0.0
        %489 = vmatprep.subr.mxu0 0.0
        %490 = vmatpush1.msra.mxu0 0.0
        %491 = vmatprep.subr.mxu0 0.0
        %492 = vmatpush1.msra.mxu0 0.0
        %493 = vmatprep.subr.mxu0 0.0
        %494 = vmatpush1.msra.mxu0 0.0
        %495 = vmatprep.subr.mxu0 0.0
        %496 = vmatpush1.msra.mxu0 0.0
        %497 = vmatprep.mubr.f32.mxu0 0.0
        %498 = vmatmul.mubr.f32.gmra.mrb[0].mxu0 %v409
        %v499 = vpop.f32.mrb[0].mxu0
        %v500 = vadd.f32 %v431, %v499
        %v501 = vpop.f32.mrb[0].mxu0
        %502 = vdwg.mxu0
        %503 = vst [vmem:[%s300] sm:$0xff] %v500
        %s504 = sand.u32 %s165, 1
        %s505 = scalar_lea.sflag [#allocation5], %s504
        %s506 = sand.u32 %s165, 1
        %s507 = smul.addr %s506, 8
        %s508 = scalar_lea.vmem [#allocation9], %s507
        // Predicated region
        $region57: #{tpu_custom_call.1} parent=39 // pred_check
          %p509 = pneg %p175
        $region58: #{tpu_custom_call.1} parent=39 // pred_check_branch
          %511 = sbr.rel (%p509) target = $region60
        $region59: #{tpu_custom_call.1} parent=39 // pred_region
          %s513 = ssub.s32 128, 128
          %514 = vsyncadd %s505, %s513
          %s515 = sadd.s32 %s28, %s27
          %s516 = smul.addr %s515, 128
          %s517 = scalar_lea.hbm %s5, %s516
          %s519 = sshll.u32 %s508, 4
          %s520 = int_to_ptr.vmem [resolvable:$true] %s519
          %522 = dma.vmem_to_hbm [thread:$0]  %s520, 128, %s517, %s505
        $region60: #{tpu_custom_call.1} parent=39 // pred_fallthru
          _
      $region40: #{tpu_custom_call.1} parent=5 // pred_fallthru
        _
      %p523 = scmp.le.s32.totalorder 2, %s18
      // Predicated region
      $region61: #{tpu_custom_call.1} parent=5 // pred_check
        %p524 = pneg %p523
      $region62: #{tpu_custom_call.1} parent=5 // pred_check_branch
        %526 = sbr.rel (%p524) target = $region64
      $region63: #{tpu_custom_call.1} parent=5 // pred_region
        %s527 = ssub.s32 %s18, 2
        // Predicated region
        $region65: #{tpu_custom_call.1} parent=63 // pred_check
          %p528 = pneg %p181
        $region66: #{tpu_custom_call.1} parent=63 // pred_check_branch
          %530 = sbr.rel (%p528) target = $region68
        $region67: #{tpu_custom_call.1} parent=63 // pred_region
          %s531 = sand.u32 %s166, 1
          %s532 = scalar_lea.sflag [#allocation5], %s531
          %s533 = sand.u32 %s166, 1
          %s534 = smul.addr %s533, 8
          %s535 = scalar_lea.vmem [#allocation9], %s534
          %536 = dma.done %s532, 128
        $region68: #{tpu_custom_call.1} parent=63 // pred_fallthru
          _
      $region64: #{tpu_custom_call.1} parent=5 // pred_fallthru
        _
    $region6: #{tpu_custom_call.1} parent=1 // loop_footer
      %s22 = sadd.s32 1, %s18
    $region7: #{tpu_custom_call.1} parent=1 // loop_footer_branch
      %17 = sbr.rel target = $region3
    $region8: #{tpu_custom_call.1} parent=1 // loop_exit
      _
    %537 = vsyncpa [#allocation4], 1
    %s538 = scalar_lea.sflag [#allocation4], 1
    %539 = vsyncpa %s538, 1
    %540 = vsyncpa [#allocation7], 1
    %541 = vsyncpa [#allocation5], 1
    %s542 = scalar_lea.sflag [#allocation5], 1
    %543 = vsyncpa %s542, 1

</llo_original>
